<compile_context>
chip_gen: v7x
topology: tpu7x:2x2x1
jax: 0.10.0
libtpu: 0.0.40
codegen_flags: <defaults>
</compile_context>

<pallas_src>
import jax
import jax.numpy as jnp
from jax.experimental import pallas as pl
from jax.experimental.pallas import tpu as pltpu

EPS = 1e-5  # nn.InstanceNorm1d default eps


def add_norm_kernel(x1_ref, x2_ref, w_ref, b_ref, o_ref):
    # x1_ref, x2_ref, o_ref: (tB, N, tE) ; w_ref, b_ref: (1, tE)
    added = (x1_ref[...] + x2_ref[...]).astype(jnp.float32)          # (tB, N, tE)
    # Statistics over the problem/seq axis N (sublane axis -> XLU reduction).
    mean = jnp.mean(added, axis=1, keepdims=True)                    # (tB, 1, tE)
    centered = added - mean                                          # for variance only
    var = jnp.mean(centered * centered, axis=1, keepdims=True)       # biased variance
    inv_std = jax.lax.rsqrt(var + EPS)                               # (tB, 1, tE)
    w = w_ref[...].astype(jnp.float32).reshape(1, 1, -1)             # (1, 1, tE)
    b = b_ref[...].astype(jnp.float32).reshape(1, 1, -1)             # (1, 1, tE)
    # Fused normalize + affine: one mul+add pass over the big tile.
    scale = inv_std * w                                              # (tB, 1, tE)
    shift = b - mean * scale                                         # (tB, 1, tE)
    o_ref[...] = (added * scale + shift).astype(o_ref.dtype)


def _vmem_budget_and_limit():
    """Per-generation VMEM sizing: (block budget bytes, vmem_limit_bytes)."""
    cap = 64 << 20  # conservative fallback (v7x per-TC VMEM)
    try:
        info = pltpu.get_tpu_info()
        cap = int(getattr(info, "vmem_capacity_bytes", cap) or cap)
    except Exception:
        pass
    limit = int(min((cap * 3) // 4, 96 << 20))      # 96 MiB on 128 MiB parts, 48 MiB on v7x
    budget = int(max(min(limit - (8 << 20), (limit * 4) // 5), 8 << 20))
    return budget, limit


def _largest_divisor_leq(n, cap):
    cap = max(1, min(n, cap))
    for d in range(cap, 0, -1):
        if n % d == 0:
            return d
    return 1


def _pick_tiles(B, N, E_pad, itemsize, budget):
    """Pick (tB, tE): tE a multiple of 128 dividing E_pad, tB a divisor of B.

    Budget model per grid step: 2x double-buffered (x1, x2, out) blocks in the
    input dtype plus ~2 f32 full-tile intermediates inside the kernel.
    """
    per_elem = 6 * itemsize + 8
    # tE: largest multiple of 128 dividing E_pad that fits with tB = 1.
    max_cols = max(128, (budget // max(1, N * per_elem)) // 128 * 128)
    te = E_pad
    while te > 128 and (te > max_cols or E_pad % te != 0):
        te -= 128
    if E_pad % te != 0:
        te = 128
    # tB: largest divisor of B whose block still fits the budget.
    max_tb = max(1, budget // max(1, N * te * per_elem))
    tb = _largest_divisor_leq(B, max_tb)
    # Keep >= 2 grid steps when possible (v7x shares the grid across 2 TCs).
    if (E_pad // te) * (B // tb) == 1:
        if B > 1:
            tb = _largest_divisor_leq(B, max(1, B // 2))
        elif E_pad // 128 > 1:
            te = _largest_divisor_leq(E_pad // 128, max(1, (E_pad // 128) // 2)) * 128
    return tb, te


def add_and_normalize(input1, input2, weight, bias):
    """input1, input2: (B, N, E); weight, bias: (E,). Returns (B, N, E)."""
    B, N, E = input1.shape
    itemsize = jnp.dtype(input1.dtype).itemsize
    budget, vmem_limit = _vmem_budget_and_limit()

    # Pad E up to a multiple of 128 so every block / store is lane-dense.
    E_pad = ((E + 127) // 128) * 128
    if E_pad != E:
        pad3 = ((0, 0), (0, 0), (0, E_pad - E))
        input1 = jnp.pad(input1, pad3)
        input2 = jnp.pad(input2, pad3)
        weight = jnp.pad(weight, (0, E_pad - E))
        bias = jnp.pad(bias, (0, E_pad - E))

    tB, tE = _pick_tiles(B, N, E_pad, itemsize, budget)
    assert E_pad % tE == 0 and B % tB == 0

    w2 = weight.reshape(1, E_pad)
    b2 = bias.reshape(1, E_pad)

    # b is the fastest-varying grid axis -> weight/bias blocks (indexed only by e)
    # keep the same block index across consecutive steps and are not re-DMA'd.
    grid = (E_pad // tE, B // tB)
    out = pl.pallas_call(
        add_norm_kernel,
        out_shape=jax.ShapeDtypeStruct((B, N, E_pad), input1.dtype),
        grid_spec=pltpu.PrefetchScalarGridSpec(
            num_scalar_prefetch=0,
            grid=grid,
            in_specs=[
                pl.BlockSpec((tB, N, tE), lambda e, b: (b, 0, e)),
                pl.BlockSpec((tB, N, tE), lambda e, b: (b, 0, e)),
                pl.BlockSpec((1, tE), lambda e, b: (0, e)),
                pl.BlockSpec((1, tE), lambda e, b: (0, e)),
            ],
            out_specs=pl.BlockSpec((tB, N, tE), lambda e, b: (b, 0, e)),
        ),
        compiler_params=pltpu.CompilerParams(
            dimension_semantics=("parallel", "parallel"),
            vmem_limit_bytes=vmem_limit,
        ),
    )(input1, input2, w2, b2)

    if E_pad != E:
        out = out[:, :, :E]
    return out


def reference(input1, input2, weight, bias):
    added = (input1 + input2).astype(jnp.float32)
    mean = jnp.mean(added, axis=1, keepdims=True)
    var = jnp.mean((added - mean) ** 2, axis=1, keepdims=True)
    normed = (added - mean) / jnp.sqrt(var + EPS)
    return (normed * weight[None, None, :] + bias[None, None, :]).astype(input1.dtype)


def _check(B, N, E, key):
    k1, k2, k3, k4 = jax.random.split(key, 4)
    x1 = jax.random.normal(k1, (B, N, E), dtype=jnp.float32)
    x2 = jax.random.normal(k2, (B, N, E), dtype=jnp.float32)
    # InstanceNorm1d(affine=True) default init is weight=1, bias=0; perturb so the
    # affine path is exercised.
    weight = 1.0 + 0.1 * jax.random.normal(k3, (E,), dtype=jnp.float32)
    bias = 0.1 * jax.random.normal(k4, (E,), dtype=jnp.float32)

    out = add_and_normalize(x1, x2, weight, bias)
    out = jax.block_until_ready(out)
    ref = reference(x1, x2, weight, bias)
    assert out.shape == (B, N, E)
    assert jnp.allclose(out, ref, atol=1e-4, rtol=1e-4), f"mismatch vs reference at {(B, N, E)}"


if __name__ == "__main__":
    key = jax.random.PRNGKey(0)
    kA, kB, kC = jax.random.split(key, 3)

    # Small shape matching the module's (batch, problem, embedding) convention
    # (exercises the odd-E zero-padding path, E=32 -> 128).
    _check(B=2, N=8, E=32, key=kA)
    # Shape that exercises the E-tiling / multi-step grid path.
    _check(B=2, N=64, E=256, key=kB)
    # Typical GNARKD-POMO/TSP shape: embedding_dim=128, problem size ~100.
    _check(B=4, N=100, E=128, key=kC)

    print("KERNEL_OK")
</pallas_src>

<mosaic_0001>
module attributes {stable_mosaic.version = 11 : i64} {
  func.func @add_norm_kernel(%arg0: i32, %arg1: i32, %arg2: memref<1x8x128xf32, #tpu.memory_space<vmem>>, %arg3: memref<1x8x128xf32, #tpu.memory_space<vmem>>, %arg4: memref<1x128xf32, #tpu.memory_space<vmem>>, %arg5: memref<1x128xf32, #tpu.memory_space<vmem>>, %arg6: memref<1x8x128xf32, #tpu.memory_space<vmem>>) attributes {dimension_semantics = [#tpu.dimension_semantics<parallel>, #tpu.dimension_semantics<parallel>], iteration_bounds = array<i64: 1, 2>, scalar_prefetch = 0 : i64, scratch_operands = 0 : i64, tpu.core_type = #tpu.core_type<tc>, window_params = [{transform_indices = @transform_0, window_bounds = array<i64: 1, 8, 128>}, {transform_indices = @transform_1, window_bounds = array<i64: 1, 8, 128>}, {transform_indices = @transform_2, window_bounds = array<i64: 1, 128>}, {transform_indices = @transform_3, window_bounds = array<i64: 1, 128>}, {transform_indices = @transform_4, window_bounds = array<i64: 1, 8, 128>}]} {
    %c0 = arith.constant 0 : index
    %c0_0 = arith.constant 0 : index
    %c0_1 = arith.constant 0 : index
    %0 = vector.load %arg2[%c0, %c0_0, %c0_1] : memref<1x8x128xf32, #tpu.memory_space<vmem>>, vector<1x8x128xf32>
    %c0_2 = arith.constant 0 : index
    %c0_3 = arith.constant 0 : index
    %c0_4 = arith.constant 0 : index
    %1 = vector.load %arg3[%c0_2, %c0_3, %c0_4] : memref<1x8x128xf32, #tpu.memory_space<vmem>>, vector<1x8x128xf32>
    %2 = arith.addf %0, %1 : vector<1x8x128xf32>
    %cst = arith.constant dense<0.000000e+00> : vector<1x128xf32>
    %3 = vector.multi_reduction <add>, %2, %cst [1] : vector<1x8x128xf32> to vector<1x128xf32>
    %4 = vector.shape_cast %3 : vector<1x128xf32> to vector<1x1x128xf32>
    %cst_5 = arith.constant 8.000000e+00 : f32
    %5 = vector.broadcast %cst_5 : f32 to vector<1x1x128xf32>
    %6 = arith.divf %4, %5 : vector<1x1x128xf32>
    %7 = vector.broadcast %6 : vector<1x1x128xf32> to vector<1x8x128xf32>
    %8 = arith.subf %2, %7 : vector<1x8x128xf32>
    %9 = arith.mulf %8, %8 : vector<1x8x128xf32>
    %cst_6 = arith.constant dense<0.000000e+00> : vector<1x128xf32>
    %10 = vector.multi_reduction <add>, %9, %cst_6 [1] : vector<1x8x128xf32> to vector<1x128xf32>
    %11 = vector.shape_cast %10 : vector<1x128xf32> to vector<1x1x128xf32>
    %cst_7 = arith.constant 8.000000e+00 : f32
    %12 = vector.broadcast %cst_7 : f32 to vector<1x1x128xf32>
    %13 = arith.divf %11, %12 : vector<1x1x128xf32>
    %cst_8 = arith.constant 9.99999974E-6 : f32
    %14 = vector.broadcast %cst_8 : f32 to vector<1x1x128xf32>
    %15 = arith.addf %13, %14 : vector<1x1x128xf32>
    %16 = math.rsqrt %15 : vector<1x1x128xf32>
    %c0_9 = arith.constant 0 : index
    %c0_10 = arith.constant 0 : index
    %17 = vector.load %arg4[%c0_9, %c0_10] : memref<1x128xf32, #tpu.memory_space<vmem>>, vector<1x128xf32>
    %18 = vector.shape_cast %17 : vector<1x128xf32> to vector<1x1x128xf32>
    %c0_11 = arith.constant 0 : index
    %c0_12 = arith.constant 0 : index
    %19 = vector.load %arg5[%c0_11, %c0_12] : memref<1x128xf32, #tpu.memory_space<vmem>>, vector<1x128xf32>
    %20 = vector.shape_cast %19 : vector<1x128xf32> to vector<1x1x128xf32>
    %21 = arith.mulf %16, %18 : vector<1x1x128xf32>
    %22 = arith.mulf %6, %21 : vector<1x1x128xf32>
    %23 = arith.subf %20, %22 : vector<1x1x128xf32>
    %24 = vector.broadcast %21 : vector<1x1x128xf32> to vector<1x8x128xf32>
    %25 = arith.mulf %2, %24 : vector<1x8x128xf32>
    %26 = vector.broadcast %23 : vector<1x1x128xf32> to vector<1x8x128xf32>
    %27 = arith.addf %25, %26 : vector<1x8x128xf32>
    %c0_13 = arith.constant 0 : index
    %c0_14 = arith.constant 0 : index
    %c0_15 = arith.constant 0 : index
    %28 = vector.load %arg6[%c0_13, %c0_14, %c0_15] : memref<1x8x128xf32, #tpu.memory_space<vmem>>, vector<1x8x128xf32>
    tpu.vector_store %arg6[%c0_13, %c0_14, %c0_15], %27 {strides = array<i32>} : memref<1x8x128xf32, #tpu.memory_space<vmem>>, vector<1x8x128xf32>,
    return
  }
  func.func @transform_0(%arg0: i32, %arg1: i32) -> (i32, i32, i32) {
    %c0_i32 = arith.constant 0 : i32
    %c0_i32_0 = arith.constant 0 : i32
    return %arg1, %c0_i32, %arg0 : i32, i32, i32
  }
  func.func @transform_1(%arg0: i32, %arg1: i32) -> (i32, i32, i32) {
    %c0_i32 = arith.constant 0 : i32
    %c0_i32_0 = arith.constant 0 : i32
    return %arg1, %c0_i32, %arg0 : i32, i32, i32
  }
  func.func @transform_2(%arg0: i32, %arg1: i32) -> (i32, i32) {
    %c0_i32 = arith.constant 0 : i32
    %c0_i32_0 = arith.constant 0 : i32
    return %c0_i32, %arg0 : i32, i32
  }
  func.func @transform_3(%arg0: i32, %arg1: i32) -> (i32, i32) {
    %c0_i32 = arith.constant 0 : i32
    %c0_i32_0 = arith.constant 0 : i32
    return %c0_i32, %arg0 : i32, i32
  }
  func.func @transform_4(%arg0: i32, %arg1: i32) -> (i32, i32, i32) {
    %c0_i32 = arith.constant 0 : i32
    %c0_i32_0 = arith.constant 0 : i32
    return %arg1, %c0_i32, %arg0 : i32, i32, i32
  }
}

</mosaic_0001>

<llo_original>
// kernel: tpu_custom_call.1
$region0: #{tpu_custom_call.1}
  #allocation0 [shape = 'u32[]', space=smem, size = 0x4, offset = 0x4, fixed_abs, tag = 'smem constant byte address 0x4 - core index']
  #allocation1 [shape = 'u32[144,128]{1,0:T(1,128)}', space=vmem, size = 0x12000, scoped, tag = 'internal scratch']
  %s0 = inlined_call_operand.hbm [shape: f32[2,8,128], index: 0, kind: input, shape index: {}]
  %s1 = inlined_call_operand.hbm [shape: f32[2,8,128], index: 1, kind: input, shape index: {}]
  %s2 = inlined_call_operand.vmem [shape: f32[1,128], index: 2, kind: input, shape index: {}]
  %s3 = inlined_call_operand.vmem [shape: f32[1,128], index: 3, kind: input, shape index: {}]
  %s4 = inlined_call_operand.hbm [shape: f32[2,8,128], index: 4, kind: output, shape index: {}]
  %s5 = sld [smem:[#allocation0]]
  $region57: #{tpu_custom_call.1} parent=0
    _
  %s7 = ssub.s32 1, %s5
  %s8 = scalar_select 0, %s7, %s5
  $region1: #{tpu_custom_call.1} parent=0
    #allocation2 [shape = 'u8[8192]{0}', space=vmem, size = 0x2000, scoped, tag = 'input window, operand 0']
    #allocation3 [shape = 's32[2]{0}', space=sflag, size = 0x8, scoped, tag = 'scoped memory for tpu_custom_call.1']
    #allocation4 [shape = 's32[2]{0}', space=sflag, size = 0x8, scoped, tag = 'scoped memory for tpu_custom_call.1']
    #allocation5 [shape = 'u8[8192]{0}', space=vmem, size = 0x2000, scoped, tag = 'input window, operand 1']
    #allocation6 [shape = 's32[2]{0}', space=sflag, size = 0x8, scoped, tag = 'scoped memory for tpu_custom_call.1']
    #allocation7 [shape = 'u8[8192]{0}', space=vmem, size = 0x2000, scoped, tag = 'output window, operand 0']
    %9 = vsyncpa [#allocation3], 0
    %s10 = scalar_lea.sflag [#allocation3], 1
    %11 = vsyncpa %s10, 0
    %12 = vsyncpa [#allocation6], 0
    %s13 = scalar_lea.sflag [#allocation6], 1
    %14 = vsyncpa %s13, 0
    %15 = vsyncpa [#allocation4], 0
    %s16 = scalar_lea.sflag [#allocation4], 1
    %17 = vsyncpa %s16, 0
    loop: start=0, step=1, limit=4
    $region2: #{tpu_custom_call.1} parent=1 // loop_pre_header
      _
    $region3: #{tpu_custom_call.1} parent=1 // loop_header
      %s19 = sphi 0, %s23
      %p20 = scmp.ge.s32.totalorder %s19, 4
      %s26 = sphi 0, %s38
      %s27 = sphi 0, %s34
      %s28 = sphi 0, %s26
      %s29 = sphi 0, %s27
      %s30 = sphi 0, %s28
      %s31 = sphi 0, %s29
      %s43 = sphi 0, %s45
      %s46 = sphi 0, %s43
      %s47 = sphi 0, %s46
      %s63 = sphi 0, %s47
      %s71 = sphi 0, %s73
      %s74 = sphi 0, %s71
      %s75 = sphi 0, %s74
      %s91 = sphi 0, %s75
      %s97 = sphi 0, %s99
      %s100 = sphi 0, %s97
      %s101 = sphi 0, %s100
      %s117 = sphi 0, %s101
      %s123 = sphi 0, %s125
      %s126 = sphi 0, %s123
      %s127 = sphi 0, %s126
      %s143 = sphi 0, %s127
      %s151 = sphi 0, %s153
      %s154 = sphi 0, %s151
      %s155 = sphi 0, %s154
      %s171 = sphi 0, %s155
    $region4: #{tpu_custom_call.1} parent=1 // loop_header_branch
      %22 = sbr.rel (%p20) target = $region8
    $region5: #{tpu_custom_call.1} parent=1 // loop_body
      %s24 = ssub.s32 %s19, 1
      %s25 = ssub.s32 %s19, 2
      %s32 = sadd.s32 1, %s27
      %p33 = scmp.ge.s32.totalorder %s32, 2
      %s34 = scalar_select %p33, 0, %s32
      %s35 = sadd.s32 1, %s26
      %s36 = scalar_select %p33, %s35, %s26
      %p37 = scmp.ge.s32.totalorder %s36, 1
      %s38 = scalar_select %p37, 0, %s36
      %s39 = ssub.s32 %s27, %s34
      %s40 = ssub.s32 %s26, %s38
      %s41 = sor.u32 %s39, %s40
      %p42 = scmp.eq.s32.totalorder %s41, 0
      %s44 = sadd.s32 %s43, 1
      %s45 = scalar_select %p42, %s43, %s44
      %p48 = pneg %p42
      %p49 = scmp.eq.s32.totalorder %s19, 1
      %p50 = por %p48, %p49
      %p51 = scmp.ne.s32.totalorder %s43, %s46
      %p52 = scmp.eq.s32.totalorder %s19, 0
      %p53 = por %p51, %p52
      %p54 = scmp.ne.s32.totalorder %s43, %s46
      %p55 = scmp.eq.s32.totalorder %s24, 1
      %p56 = por %p54, %p55
      %p57 = scmp.ne.s32.totalorder %s46, %s47
      %p58 = scmp.eq.s32.totalorder %s24, 0
      %p59 = por %p57, %p58
      %p60 = scmp.ne.s32.totalorder %s46, %s47
      %p61 = scmp.eq.s32.totalorder %s25, 1
      %p62 = por %p60, %p61
      %p64 = scmp.ne.s32.totalorder %s47, %s63
      %p65 = scmp.eq.s32.totalorder %s25, 0
      %p66 = por %p64, %p65
      %s67 = ssub.s32 %s27, %s34
      %s68 = ssub.s32 %s26, %s38
      %s69 = sor.u32 %s67, %s68
      %p70 = scmp.eq.s32.totalorder %s69, 0
      %s72 = sadd.s32 %s71, 1
      %s73 = scalar_select %p70, %s71, %s72
      %p76 = pneg %p70
      %p77 = scmp.eq.s32.totalorder %s19, 1
      %p78 = por %p76, %p77
      %p79 = scmp.ne.s32.totalorder %s71, %s74
      %p80 = scmp.eq.s32.totalorder %s19, 0
      %p81 = por %p79, %p80
      %p82 = scmp.ne.s32.totalorder %s71, %s74
      %p83 = scmp.eq.s32.totalorder %s24, 1
      %p84 = por %p82, %p83
      %p85 = scmp.ne.s32.totalorder %s74, %s75
      %p86 = scmp.eq.s32.totalorder %s24, 0
      %p87 = por %p85, %p86
      %p88 = scmp.ne.s32.totalorder %s74, %s75
      %p89 = scmp.eq.s32.totalorder %s25, 1
      %p90 = por %p88, %p89
      %p92 = scmp.ne.s32.totalorder %s75, %s91
      %p93 = scmp.eq.s32.totalorder %s25, 0
      %p94 = por %p92, %p93
      %s95 = ssub.s32 %s26, %s38
      %p96 = scmp.eq.s32.totalorder %s95, 0
      %s98 = sadd.s32 %s97, 1
      %s99 = scalar_select %p96, %s97, %s98
      %p102 = pneg %p96
      %p103 = scmp.eq.s32.totalorder %s19, 1
      %p104 = por %p102, %p103
      %p105 = scmp.ne.s32.totalorder %s97, %s100
      %p106 = scmp.eq.s32.totalorder %s19, 0
      %p107 = por %p105, %p106
      %p108 = scmp.ne.s32.totalorder %s97, %s100
      %p109 = scmp.eq.s32.totalorder %s24, 1
      %p110 = por %p108, %p109
      %p111 = scmp.ne.s32.totalorder %s100, %s101
      %p112 = scmp.eq.s32.totalorder %s24, 0
      %p113 = por %p111, %p112
      %p114 = scmp.ne.s32.totalorder %s100, %s101
      %p115 = scmp.eq.s32.totalorder %s25, 1
      %p116 = por %p114, %p115
      %p118 = scmp.ne.s32.totalorder %s101, %s117
      %p119 = scmp.eq.s32.totalorder %s25, 0
      %p120 = por %p118, %p119
      %s121 = ssub.s32 %s26, %s38
      %p122 = scmp.eq.s32.totalorder %s121, 0
      %s124 = sadd.s32 %s123, 1
      %s125 = scalar_select %p122, %s123, %s124
      %p128 = pneg %p122
      %p129 = scmp.eq.s32.totalorder %s19, 1
      %p130 = por %p128, %p129
      %p131 = scmp.ne.s32.totalorder %s123, %s126
      %p132 = scmp.eq.s32.totalorder %s19, 0
      %p133 = por %p131, %p132
      %p134 = scmp.ne.s32.totalorder %s123, %s126
      %p135 = scmp.eq.s32.totalorder %s24, 1
      %p136 = por %p134, %p135
      %p137 = scmp.ne.s32.totalorder %s126, %s127
      %p138 = scmp.eq.s32.totalorder %s24, 0
      %p139 = por %p137, %p138
      %p140 = scmp.ne.s32.totalorder %s126, %s127
      %p141 = scmp.eq.s32.totalorder %s25, 1
      %p142 = por %p140, %p141
      %p144 = scmp.ne.s32.totalorder %s127, %s143
      %p145 = scmp.eq.s32.totalorder %s25, 0
      %p146 = por %p144, %p145
      %s147 = ssub.s32 %s27, %s34
      %s148 = ssub.s32 %s26, %s38
      %s149 = sor.u32 %s147, %s148
      %p150 = scmp.eq.s32.totalorder %s149, 0
      %s152 = sadd.s32 %s151, 1
      %s153 = scalar_select %p150, %s151, %s152
      %p156 = pneg %p150
      %p157 = scmp.eq.s32.totalorder %s19, 1
      %p158 = por %p156, %p157
      %p159 = scmp.ne.s32.totalorder %s151, %s154
      %p160 = scmp.eq.s32.totalorder %s19, 0
      %p161 = por %p159, %p160
      %p162 = scmp.ne.s32.totalorder %s151, %s154
      %p163 = scmp.eq.s32.totalorder %s24, 1
      %p164 = por %p162, %p163
      %p165 = scmp.ne.s32.totalorder %s154, %s155
      %p166 = scmp.eq.s32.totalorder %s24, 0
      %p167 = por %p165, %p166
      %p168 = scmp.ne.s32.totalorder %s154, %s155
      %p169 = scmp.eq.s32.totalorder %s25, 1
      %p170 = por %p168, %p169
      %p172 = scmp.ne.s32.totalorder %s155, %s171
      %p173 = scmp.eq.s32.totalorder %s25, 0
      %p174 = por %p172, %p173
      %p175 = scmp.le.s32.totalorder 1, %s19
      %p176 = scmp.lt.s32.totalorder %s19, 3
      %p177 = pnand %p175, %p176
      %p178 = pneg %p177
      // Predicated region
      $region9: #{tpu_custom_call.1} parent=5 // pred_check
        _
      $region10: #{tpu_custom_call.1} parent=5 // pred_check_branch
        %180 = sbr.rel (%p177) target = $region12
      $region11: #{tpu_custom_call.1} parent=5 // pred_region
        %s181 = ssub.s32 %s19, 1
        // Predicated region
        $region13: #{tpu_custom_call.1} parent=11 // pred_check
          %p182 = pneg %p113
        $region14: #{tpu_custom_call.1} parent=11 // pred_check_branch
          %184 = sbr.rel (%p182) target = $region16
        $region15: #{tpu_custom_call.1} parent=11 // pred_region
          %p185 = scmp.lt.s32.totalorder %s28, 0
          %s186 = scalar_select %p185, %s28, 0
          %s187 = scalar_lea.vmem %s2, %s186
        $region16: #{tpu_custom_call.1} parent=11 // pred_fallthru
          _
        // Predicated region
        $region17: #{tpu_custom_call.1} parent=11 // pred_check
          %p188 = pneg %p139
        $region18: #{tpu_custom_call.1} parent=11 // pred_check_branch
          %190 = sbr.rel (%p188) target = $region20
        $region19: #{tpu_custom_call.1} parent=11 // pred_region
          %p191 = scmp.lt.s32.totalorder %s28, 0
          %s192 = scalar_select %p191, %s28, 0
          %s193 = scalar_lea.vmem %s3, %s192
        $region20: #{tpu_custom_call.1} parent=11 // pred_fallthru
          _
      $region12: #{tpu_custom_call.1} parent=5 // pred_fallthru
        _
      %p194 = scmp.lt.s32.totalorder %s19, 2
      // Predicated region
      $region21: #{tpu_custom_call.1} parent=5 // pred_check
        %p195 = pneg %p194
      $region22: #{tpu_custom_call.1} parent=5 // pred_check_branch
        %197 = sbr.rel (%p195) target = $region24
      $region23: #{tpu_custom_call.1} parent=5 // pred_region
        // Predicated region
        $region25: #{tpu_custom_call.1} parent=23 // pred_check
          %p198 = pneg %p53
        $region26: #{tpu_custom_call.1} parent=23 // pred_check_branch
          %200 = sbr.rel (%p198) target = $region28
        $region27: #{tpu_custom_call.1} parent=23 // pred_region
          %s201 = sand.u32 %s43, 1
          %s202 = scalar_lea.sflag [#allocation3], %s201
          %s203 = sand.u32 %s43, 1
          %s204 = smul.addr %s203, 8
          %s205 = scalar_lea.vmem [#allocation2], %s204
          %s207 = ssub.s32 128, 128
          %208 = vsyncadd %s202, %s207
          %s209 = sadd.s32 %s26, %s27
          %s210 = smul.addr %s209, 128
          %s211 = scalar_lea.hbm %s0, %s210
          %s213 = sshll.u32 %s205, 4
          %s214 = int_to_ptr.vmem [resolvable:$true] %s213
          %216 = dma.hbm_to_vmem [thread:$0]  %s211, 128, %s214, %s202
        $region28: #{tpu_custom_call.1} parent=23 // pred_fallthru
          _
        // Predicated region
        $region29: #{tpu_custom_call.1} parent=23 // pred_check
          %p217 = pneg %p81
        $region30: #{tpu_custom_call.1} parent=23 // pred_check_branch
          %219 = sbr.rel (%p217) target = $region32
        $region31: #{tpu_custom_call.1} parent=23 // pred_region
          %s220 = sand.u32 %s71, 1
          %s221 = scalar_lea.sflag [#allocation6], %s220
          %s222 = sand.u32 %s71, 1
          %s223 = smul.addr %s222, 8
          %s224 = scalar_lea.vmem [#allocation5], %s223
          %s226 = ssub.s32 128, 128
          %227 = vsyncadd %s221, %s226
          %s228 = sadd.s32 %s26, %s27
          %s229 = smul.addr %s228, 128
          %s230 = scalar_lea.hbm %s1, %s229
          %s232 = sshll.u32 %s224, 4
          %s233 = int_to_ptr.vmem [resolvable:$true] %s232
          %235 = dma.hbm_to_vmem [thread:$0]  %s230, 128, %s233, %s221
        $region32: #{tpu_custom_call.1} parent=23 // pred_fallthru
          _
      $region24: #{tpu_custom_call.1} parent=5 // pred_fallthru
        _
      %p236 = scmp.le.s32.totalorder 1, %s19
      %p237 = scmp.lt.s32.totalorder %s19, 3
      %p238 = pnand %p236, %p237
      %p239 = pneg %p238
      // Predicated region
      $region33: #{tpu_custom_call.1} parent=5 // pred_check
        _
      $region34: #{tpu_custom_call.1} parent=5 // pred_check_branch
        %241 = sbr.rel (%p238) target = $region36
      $region35: #{tpu_custom_call.1} parent=5 // pred_region
        %s242 = ssub.s32 %s19, 1
        %s243 = sand.u32 %s46, 1
        %s244 = scalar_lea.sflag [#allocation3], %s243
        %s245 = sand.u32 %s46, 1
        %s246 = smul.addr %s245, 8
        %s247 = scalar_lea.vmem [#allocation2], %s246
        // Predicated region
        $region37: #{tpu_custom_call.1} parent=35 // pred_check
          %p248 = pneg %p59
        $region38: #{tpu_custom_call.1} parent=35 // pred_check_branch
          %250 = sbr.rel (%p248) target = $region40
        $region39: #{tpu_custom_call.1} parent=35 // pred_region
          %251 = dma.done %s244, 128
        $region40: #{tpu_custom_call.1} parent=35 // pred_fallthru
          _
        %s252 = sand.u32 %s74, 1
        %s253 = scalar_lea.sflag [#allocation6], %s252
        %s254 = sand.u32 %s74, 1
        %s255 = smul.addr %s254, 8
        %s256 = scalar_lea.vmem [#allocation5], %s255
        // Predicated region
        $region41: #{tpu_custom_call.1} parent=35 // pred_check
          %p257 = pneg %p87
        $region42: #{tpu_custom_call.1} parent=35 // pred_check_branch
          %259 = sbr.rel (%p257) target = $region44
        $region43: #{tpu_custom_call.1} parent=35 // pred_region
          %260 = dma.done %s253, 128
        $region44: #{tpu_custom_call.1} parent=35 // pred_fallthru
          _
        %s261 = sand.u32 %s46, 1
        %s262 = scalar_lea.sflag [#allocation3], %s261
        %s263 = sand.u32 %s46, 1
        %s264 = smul.addr %s263, 8
        %s265 = scalar_lea.vmem [#allocation2], %s264
        %p266 = pneg %p59
        %p267 = pneg %p56
        %s268 = sand.u32 %s74, 1
        %s269 = scalar_lea.sflag [#allocation6], %s268
        %s270 = sand.u32 %s74, 1
        %s271 = smul.addr %s270, 8
        %s272 = scalar_lea.vmem [#allocation5], %s271
        %p273 = pneg %p87
        %p274 = pneg %p84
        %p275 = scmp.lt.s32.totalorder %s28, 0
        %s276 = scalar_select %p275, %s28, 0
        %s277 = scalar_lea.vmem %s2, %s276
        %p278 = pneg %p113
        %p279 = pneg %p110
        %p280 = scmp.lt.s32.totalorder %s28, 0
        %s281 = scalar_select %p280, %s28, 0
        %s282 = scalar_lea.vmem %s3, %s281
        %p283 = pneg %p139
        %p284 = pneg %p136
        %p285 = pneg %p167
        %p286 = pneg %p164
        %s287 = sand.u32 %s154, 1
        %s288 = scalar_lea.sflag [#allocation4], %s287
        %s289 = sand.u32 %s154, 1
        %s290 = smul.addr %s289, 8
        %s291 = scalar_lea.vmem [#allocation7], %s290
        %p292 = scmp.lt.s32.totalorder %s28, 0
        %s293 = scalar_select %p292, %s28, 0
        %s294 = scalar_lea.vmem %s2, %s293
        %p295 = scmp.lt.s32.totalorder %s28, 0
        %s296 = scalar_select %p295, %s28, 0
        %s297 = scalar_lea.vmem %s3, %s296
        %v298 = vld [vmem:[%s247] sm:$0xff]
        %v299 = vld [vmem:[%s256] sm:$0xff]
        %v300 = vadd.f32 %v298, %v299
        %v301 = vrot.slane %v300, 4
        %v302 = vadd.f32 %v300, %v301
        %v303 = vrot.slane %v302, 2
        %v304 = vadd.f32 %v302, %v303
        %v305 = vrot.slane %v304, 1
        %v306 = vadd.f32 %v304, %v305
        %v307 = vrcp.pop 8.0
        %v308 = vmul.f32 %v306, %v307
        %v309 = vsub.f32 %v300, %v308
        %v310 = vmul.f32 %v309, %v309
        %v311 = vrot.slane %v310, 4
        %v312 = vadd.f32 %v310, %v311
        %v313 = vrot.slane %v312, 2
        %v314 = vadd.f32 %v312, %v313
        %v315 = vrot.slane %v314, 1
        %v316 = vadd.f32 %v314, %v315
        %v317 = vmul.f32 %v316, %v307
        %v318 = vadd.f32 %v317, 1e-05
        %v319 = vrsqrt.pop %v318
        %v320 = vld [vmem:[%s294] sm:$0x1]
        %v321 = vld [vmem:[%s297] sm:$0x1]
        %v322 = vmul.f32 %v319, %v320
        %v323 = vmul.f32 %v308, %v322
        %v324 = vsub.f32 %v321, %v323
        %v325 = vlaneseq
        %v326 = vshrl.u32 %v325, 7
        %v327 = vsub.s32 0, %v326
        %v328 = vrot.slane %v322, %v327
        %v329 = vmul.f32 %v300, %v328
        %v331 = vlaneseq
        %v332 = vshrl.u32 %v331, 7
        %v333 = vsub.s32 0, %v332
        %v334 = vrot.slane %v324, %v333
        %v336 = vadd.f32 %v329, %v334
        %337 = vst [vmem:[%s291] sm:$0xff] %v336
        %s338 = sand.u32 %s154, 1
        %s339 = scalar_lea.sflag [#allocation4], %s338
        %s340 = sand.u32 %s154, 1
        %s341 = smul.addr %s340, 8
        %s342 = scalar_lea.vmem [#allocation7], %s341
        // Predicated region
        $region45: #{tpu_custom_call.1} parent=35 // pred_check
          %p343 = pneg %p164
        $region46: #{tpu_custom_call.1} parent=35 // pred_check_branch
          %345 = sbr.rel (%p343) target = $region48
        $region47: #{tpu_custom_call.1} parent=35 // pred_region
          %s347 = ssub.s32 128, 128
          %348 = vsyncadd %s339, %s347
          %s349 = sadd.s32 %s28, %s29
          %s350 = smul.addr %s349, 128
          %s351 = scalar_lea.hbm %s4, %s350
          %s353 = sshll.u32 %s342, 4
          %s354 = int_to_ptr.vmem [resolvable:$true] %s353
          %356 = dma.vmem_to_hbm [thread:$0]  %s354, 128, %s351, %s339
        $region48: #{tpu_custom_call.1} parent=35 // pred_fallthru
          _
      $region36: #{tpu_custom_call.1} parent=5 // pred_fallthru
        _
      %p357 = scmp.le.s32.totalorder 2, %s19
      // Predicated region
      $region49: #{tpu_custom_call.1} parent=5 // pred_check
        %p358 = pneg %p357
      $region50: #{tpu_custom_call.1} parent=5 // pred_check_branch
        %360 = sbr.rel (%p358) target = $region52
      $region51: #{tpu_custom_call.1} parent=5 // pred_region
        %s361 = ssub.s32 %s19, 2
        // Predicated region
        $region53: #{tpu_custom_call.1} parent=51 // pred_check
          %p362 = pneg %p170
        $region54: #{tpu_custom_call.1} parent=51 // pred_check_branch
          %364 = sbr.rel (%p362) target = $region56
        $region55: #{tpu_custom_call.1} parent=51 // pred_region
          %s365 = sand.u32 %s155, 1
          %s366 = scalar_lea.sflag [#allocation4], %s365
          %s367 = sand.u32 %s155, 1
          %s368 = smul.addr %s367, 8
          %s369 = scalar_lea.vmem [#allocation7], %s368
          %370 = dma.done %s366, 128
        $region56: #{tpu_custom_call.1} parent=51 // pred_fallthru
          _
      $region52: #{tpu_custom_call.1} parent=5 // pred_fallthru
        _
    $region6: #{tpu_custom_call.1} parent=1 // loop_footer
      %s23 = sadd.s32 1, %s19
    $region7: #{tpu_custom_call.1} parent=1 // loop_footer_branch
      %18 = sbr.rel target = $region3
    $region8: #{tpu_custom_call.1} parent=1 // loop_exit
      _
    %371 = vsyncpa [#allocation3], 1
    %s372 = scalar_lea.sflag [#allocation3], 1
    %373 = vsyncpa %s372, 1
    %374 = vsyncpa [#allocation6], 1
    %s375 = scalar_lea.sflag [#allocation6], 1
    %376 = vsyncpa %s375, 1
    %377 = vsyncpa [#allocation4], 1
    %s378 = scalar_lea.sflag [#allocation4], 1
    %379 = vsyncpa %s378, 1

</llo_original>
